<compile_context>
chip_gen: v7x
topology: tpu7x:2x2x1
jax: 0.10.0
libtpu: 0.0.40
codegen_flags: <defaults>
</compile_context>

<pallas_src>
import functools

import jax
import jax.numpy as jnp
from jax.experimental import pallas as pl
from jax.experimental.pallas import tpu as pltpu


def _eca_kernel(w_ref, x_ref, o_ref, *, k_size, channels_on_lanes):
    # w_ref: SMEM (k,) f32 conv taps.
    # x_ref/o_ref: VMEM (Bt, HW, C) if channels_on_lanes else (Bt, C, HW), native dtype.
    x = x_ref[...]
    xf = x.astype(jnp.float32)

    if channels_on_lanes:
        hw = x.shape[1]
        m = jnp.sum(xf, axis=1) * (1.0 / hw)          # (Bt, C), C on lanes
    else:
        hw = x.shape[2]
        m = jnp.sum(xf, axis=2) * (1.0 / hw)          # (Bt, C), C on lanes

    C = m.shape[-1]
    pad = (k_size - 1) // 2

    # Conv1d(1, 1, k, padding=(k-1)//2, bias=False) along the channel axis,
    # vectorized over the Bt rows.  y[c] = sum_j w[j] * m[c + j - pad] (zero pad).
    acc = jnp.zeros_like(m)
    if pad > 0 and C % 128 == 0:
        # Lane-rotate + edge-mask formulation: XLU roll instead of lane-crossing
        # concat/slice copies (realistic ECA channel counts are multiples of 128).
        ch = jax.lax.broadcasted_iota(jnp.int32, m.shape, 1)
        for j in range(k_size):                       # k is tiny -> static unroll
            off = j - pad
            if off == 0:
                tap = m
            else:
                tap = pltpu.roll(m, shift=-off, axis=1)
                tap = jnp.where((ch + off >= 0) & (ch + off < C), tap, 0.0)
            acc = acc + w_ref[j] * tap
    else:
        # Tiny-C fallback: zero-pad then static slices of the (Bt, C+2p) vector.
        if pad > 0:
            zeros = jnp.zeros((m.shape[0], pad), dtype=m.dtype)
            m_pad = jnp.concatenate([zeros, m, zeros], axis=-1)
        else:
            m_pad = m
        for j in range(k_size):
            acc = acc + w_ref[j] * m_pad[:, j:j + C]

    s = jax.nn.sigmoid(acc).astype(x.dtype)           # (Bt, C) gate, native dtype
    if channels_on_lanes:
        o_ref[...] = x * s[:, None, :]
    else:
        o_ref[...] = x * s[:, :, None]


def _pick_batch_tile(B, per_batch_bytes, budget=4 << 20, tiny=512 << 10):
    """Batch rows per grid step: fold tiny problems into a single DMA; otherwise
    keep blocks ~<= budget and leave >=2 grid steps for v7x's two TensorCores."""
    if B * per_batch_bytes <= tiny:
        return B
    bt = max(1, min(B, budget // max(per_batch_bytes, 1)))
    while B % bt:
        bt -= 1
    if bt == B and B > 1:
        bt = max(1, B // 2)
        while B % bt:
            bt -= 1
    return bt


def eca_forward(x, conv_weight, *, data_format="NCHW"):
    """ECA forward pass.

    x: (B, C, H, W) if data_format == "NCHW" (PyTorch layout) or (B, H, W, C) if
       "NHWC" (lane-dense channel layout, preferred when C is large).
    conv_weight: (1, 1, k) PyTorch Conv1d weight (no bias).  Output keeps x.dtype.
    """
    k_size = int(conv_weight.shape[-1])
    w = conv_weight.reshape(k_size).astype(jnp.float32)

    if data_format == "NCHW":
        B, C, H, W = x.shape
        xr = x.reshape(B, C, H * W)                   # free reshape, HW on lanes
        channels_on_lanes = False
    elif data_format == "NHWC":
        B, H, W, C = x.shape
        xr = x.reshape(B, H * W, C)                   # free reshape, C on lanes
        channels_on_lanes = True
    else:
        raise ValueError(f"unsupported data_format: {data_format}")

    per_batch_bytes = C * H * W * xr.dtype.itemsize
    bt = _pick_batch_tile(B, per_batch_bytes)
    block = (bt, xr.shape[1], xr.shape[2])
    block_bytes = bt * per_batch_bytes
    # in + out, double-buffered, plus headroom; clamp to v7x physical VMEM.
    vmem_limit = int(min(64 << 20, max(32 << 20, 4 * block_bytes + (8 << 20))))

    out = pl.pallas_call(
        functools.partial(_eca_kernel, k_size=k_size,
                          channels_on_lanes=channels_on_lanes),
        out_shape=jax.ShapeDtypeStruct(xr.shape, xr.dtype),
        grid=(B // bt,),
        in_specs=[
            pl.BlockSpec(memory_space=pltpu.MemorySpace.SMEM),      # conv taps
            pl.BlockSpec(block, lambda b: (b, 0, 0)),               # x tile
        ],
        out_specs=pl.BlockSpec(block, lambda b: (b, 0, 0)),
        compiler_params=pltpu.CompilerParams(
            dimension_semantics=("parallel",),
            vmem_limit_bytes=vmem_limit,
        ),
    )(w, xr)
    return out.reshape(x.shape)


def _eca_reference(x_nchw, conv_weight):
    """Pure-JAX (f32) reference mirroring the PyTorch forward pass."""
    B, C, H, W = x_nchw.shape
    k = conv_weight.shape[-1]
    pad = (k - 1) // 2
    w = conv_weight.reshape(k).astype(jnp.float32)
    xf = x_nchw.astype(jnp.float32)
    m = xf.mean(axis=(2, 3))                                        # (B, C)
    m_pad = jnp.pad(m, ((0, 0), (pad, pad)))
    y = sum(w[j] * m_pad[:, j:j + C] for j in range(k))             # (B, C)
    s = jax.nn.sigmoid(y)
    return xf * s[:, :, None, None]


if __name__ == "__main__":
    key = jax.random.PRNGKey(0)
    kx, kw, kx2 = jax.random.split(key, 3)

    B, C, H, W = 2, 4, 16, 16
    k_size = 3

    x = jax.random.normal(kx, (B, C, H, W), dtype=jnp.float32)
    bound = (1.0 / k_size) ** 0.5
    conv_weight = jax.random.uniform(
        kw, (1, 1, k_size), dtype=jnp.float32, minval=-bound, maxval=bound)

    # NCHW / f32 path (PyTorch layout).
    out = jax.block_until_ready(eca_forward(x, conv_weight))
    ref = _eca_reference(x, conv_weight)
    assert out.shape == x.shape and out.dtype == x.dtype
    assert jnp.allclose(out, ref, atol=1e-5, rtol=1e-5), "NCHW mismatch vs reference"

    # NHWC / bf16 path (native-dtype I/O, channels on lanes).
    B2, H2, W2, C2 = 2, 4, 4, 8
    x2 = jax.random.normal(kx2, (B2, H2, W2, C2), dtype=jnp.float32).astype(jnp.bfloat16)
    out2 = jax.block_until_ready(eca_forward(x2, conv_weight, data_format="NHWC"))
    assert out2.shape == x2.shape and out2.dtype == jnp.bfloat16
    ref2 = _eca_reference(jnp.transpose(x2.astype(jnp.float32), (0, 3, 1, 2)), conv_weight)
    ref2 = jnp.transpose(ref2, (0, 2, 3, 1))
    assert jnp.allclose(out2.astype(jnp.float32), ref2, atol=5e-2, rtol=5e-2), \
        "NHWC/bf16 mismatch vs reference"

    print("KERNEL_OK")
</pallas_src>

<mosaic_0001>
module attributes {stable_mosaic.version = 11 : i64} {
  func.func @_eca_kernel(%arg0: i32, %arg1: memref<3xf32, #tpu.memory_space<smem>>, %arg2: memref<2x4x256xf32, #tpu.memory_space<vmem>>, %arg3: memref<2x4x256xf32, #tpu.memory_space<vmem>>) attributes {dimension_semantics = [#tpu.dimension_semantics<parallel>], iteration_bounds = array<i64: 1>, scalar_prefetch = 0 : i64, scratch_operands = 0 : i64, tpu.core_type = #tpu.core_type<tc>, window_params = [{transform_indices = @transform_0, window_bounds = array<i64: 3>}, {transform_indices = @transform_1, window_bounds = array<i64: 2, 4, 256>}, {transform_indices = @transform_2, window_bounds = array<i64: 2, 4, 256>}]} {
    %c0 = arith.constant 0 : index
    %c0_0 = arith.constant 0 : index
    %c0_1 = arith.constant 0 : index
    %0 = vector.load %arg2[%c0, %c0_0, %c0_1] : memref<2x4x256xf32, #tpu.memory_space<vmem>>, vector<2x4x256xf32>
    %cst = arith.constant dense<0.000000e+00> : vector<2x4xf32>
    %1 = vector.multi_reduction <add>, %0, %cst [2] : vector<2x4x256xf32> to vector<2x4xf32>
    %cst_2 = arith.constant 3.906250e-03 : f32
    %2 = vector.broadcast %cst_2 : f32 to vector<2x4xf32>
    %3 = arith.mulf %1, %2 : vector<2x4xf32>
    %cst_3 = arith.constant 0.000000e+00 : f32
    %4 = vector.broadcast %cst_3 : f32 to vector<2x4xf32>
    %cst_4 = arith.constant 0.000000e+00 : f32
    %5 = vector.broadcast %cst_4 : f32 to vector<2x1xf32>
    %6 = tpu.concatenate %5, %3, %5 in 1 : vector<2x1xf32>, vector<2x4xf32>, vector<2x1xf32> -> vector<2x6xf32>
    %c0_5 = arith.constant 0 : index
    %7 = memref.load %arg1[%c0_5] : memref<3xf32, #tpu.memory_space<smem>>
    %8 = vector.extract_strided_slice %6 {offsets = [0, 0], sizes = [2, 4], strides = [1, 1]} : vector<2x6xf32> to vector<2x4xf32>
    %9 = vector.broadcast %7 : f32 to vector<2x4xf32>
    %10 = arith.mulf %9, %8 : vector<2x4xf32>
    %11 = arith.addf %4, %10 : vector<2x4xf32>
    %c1 = arith.constant 1 : index
    %12 = memref.load %arg1[%c1] : memref<3xf32, #tpu.memory_space<smem>>
    %13 = vector.extract_strided_slice %6 {offsets = [0, 1], sizes = [2, 4], strides = [1, 1]} : vector<2x6xf32> to vector<2x4xf32>
    %14 = vector.broadcast %12 : f32 to vector<2x4xf32>
    %15 = arith.mulf %14, %13 : vector<2x4xf32>
    %16 = arith.addf %11, %15 : vector<2x4xf32>
    %c2 = arith.constant 2 : index
    %17 = memref.load %arg1[%c2] : memref<3xf32, #tpu.memory_space<smem>>
    %18 = vector.extract_strided_slice %6 {offsets = [0, 2], sizes = [2, 4], strides = [1, 1]} : vector<2x6xf32> to vector<2x4xf32>
    %19 = vector.broadcast %17 : f32 to vector<2x4xf32>
    %20 = arith.mulf %19, %18 : vector<2x4xf32>
    %21 = arith.addf %16, %20 : vector<2x4xf32>
    %22 = arith.negf %21 : vector<2x4xf32>
    %23 = math.exp %22 : vector<2x4xf32>
    %cst_6 = arith.constant 1.000000e+00 : f32
    %24 = vector.broadcast %cst_6 : f32 to vector<2x4xf32>
    %25 = arith.addf %24, %23 : vector<2x4xf32>
    %26 = arith.divf %24, %25 : vector<2x4xf32>
    %27 = vector.shape_cast %26 : vector<2x4xf32> to vector<2x4x1xf32>
    %28 = vector.broadcast %27 : vector<2x4x1xf32> to vector<2x4x256xf32>
    %29 = arith.mulf %0, %28 : vector<2x4x256xf32>
    %c0_7 = arith.constant 0 : index
    %c0_8 = arith.constant 0 : index
    %c0_9 = arith.constant 0 : index
    %30 = vector.load %arg3[%c0_7, %c0_8, %c0_9] : memref<2x4x256xf32, #tpu.memory_space<vmem>>, vector<2x4x256xf32>
    tpu.vector_store %arg3[%c0_7, %c0_8, %c0_9], %29 {strides = array<i32>} : memref<2x4x256xf32, #tpu.memory_space<vmem>>, vector<2x4x256xf32>,
    return
  }
  func.func @transform_0(%arg0: i32) -> i32 {
    %c0_i32 = arith.constant 0 : i32
    %c0_i32_0 = arith.constant 0 : i32
    return %c0_i32 : i32
  }
  func.func @transform_1(%arg0: i32) -> (i32, i32, i32) {
    %c0_i32 = arith.constant 0 : i32
    %c0_i32_0 = arith.constant 0 : i32
    %c0_i32_1 = arith.constant 0 : i32
    return %arg0, %c0_i32, %c0_i32_0 : i32, i32, i32
  }
  func.func @transform_2(%arg0: i32) -> (i32, i32, i32) {
    %c0_i32 = arith.constant 0 : i32
    %c0_i32_0 = arith.constant 0 : i32
    %c0_i32_1 = arith.constant 0 : i32
    return %arg0, %c0_i32, %c0_i32_0 : i32, i32, i32
  }
}

</mosaic_0001>

<llo_original>
// kernel: tpu_custom_call.1
$region0: #{tpu_custom_call.1}
  #allocation0 [shape = 'u32[]', space=smem, size = 0x4, offset = 0x4, fixed_abs, tag = 'smem constant byte address 0x4 - core index']
  #allocation1 [shape = 'u32[144,128]{1,0:T(1,128)}', space=vmem, size = 0x12000, scoped, tag = 'internal scratch']
  %s0 = inlined_call_operand.hbm [shape: f32[3], index: 0, kind: input, shape index: {}]
  %s1 = inlined_call_operand.hbm [shape: f32[2,4,256], index: 1, kind: input, shape index: {}]
  %s2 = inlined_call_operand.hbm [shape: f32[2,4,256], index: 2, kind: output, shape index: {}]
  %s3 = sld [smem:[#allocation0]]
  $region26: #{tpu_custom_call.1} parent=0
    _
  %s5 = ssub.s32 1, %s3
  %s6 = scalar_select 0, %s5, %s3
  $region1: #{tpu_custom_call.1} parent=0
    #allocation2 [shape = 'u8[512]{0}', space=smem, size = 0x200, scoped, tag = 'input window, operand 0, single buffered']
    #allocation3 [shape = 's32[1]{0}', space=sflag, size = 0x4, scoped, tag = 'scoped memory for tpu_custom_call.1']
    #allocation4 [shape = 's32[1]{0}', space=sflag, size = 0x4, scoped, tag = 'scoped memory for tpu_custom_call.1']
    #allocation5 [shape = 's32[1]{0}', space=sflag, size = 0x4, scoped, tag = 'scoped memory for tpu_custom_call.1']
    #allocation6 [shape = 'u8[8192]{0}', space=vmem, size = 0x2000, scoped, tag = 'input window, operand 1, single buffered']
    #allocation7 [shape = 'u8[8192]{0}', space=vmem, size = 0x2000, scoped, tag = 'output window, operand 0, single buffered']
    %7 = vsyncpa [#allocation5], 0
    %8 = vsyncpa [#allocation3], 0
    %9 = vsyncpa [#allocation4], 0
    // Predicated region
    $region2: #{tpu_custom_call.1} parent=1 // pred_check
      _
    $region3: #{tpu_custom_call.1} parent=1 // pred_check_branch
      %11 = sbr.rel (0) target = $region5
    $region4: #{tpu_custom_call.1} parent=1 // pred_region
      %s13 = ssub.s32 16, 16
      %14 = vsyncadd [#allocation5], %s13
      %17 = dma.hbm_to_smem %s0, 16, [#allocation2], [#allocation5]
    $region5: #{tpu_custom_call.1} parent=1 // pred_fallthru
      _
    // Predicated region
    $region6: #{tpu_custom_call.1} parent=1 // pred_check
      _
    $region7: #{tpu_custom_call.1} parent=1 // pred_check_branch
      %19 = sbr.rel (0) target = $region9
    $region8: #{tpu_custom_call.1} parent=1 // pred_region
      %s21 = ssub.s32 256, 256
      %22 = vsyncadd [#allocation3], %s21
      %s23 = sshll.u32 [#allocation6], 4
      %s24 = int_to_ptr.vmem [resolvable:$true] %s23
      %29 = dma.hbm_to_vmem [thread:$0]  %s1, 256, %s24, [#allocation3], 128, 128, 8
    $region9: #{tpu_custom_call.1} parent=1 // pred_fallthru
      _
    // Predicated region
    $region10: #{tpu_custom_call.1} parent=1 // pred_check
      _
    $region11: #{tpu_custom_call.1} parent=1 // pred_check_branch
      %31 = sbr.rel (0) target = $region13
    $region12: #{tpu_custom_call.1} parent=1 // pred_region
      %32 = dma.done [#allocation5], 16
    $region13: #{tpu_custom_call.1} parent=1 // pred_fallthru
      _
    // Predicated region
    $region14: #{tpu_custom_call.1} parent=1 // pred_check
      _
    $region15: #{tpu_custom_call.1} parent=1 // pred_check_branch
      %34 = sbr.rel (0) target = $region17
    $region16: #{tpu_custom_call.1} parent=1 // pred_region
      %35 = dma.done [#allocation3], 256
    $region17: #{tpu_custom_call.1} parent=1 // pred_fallthru
      _
    %36 = sfence
    %v37 = vld [vmem:[#allocation6] sm:$0xff]
    %v38 = vld [vmem:[#allocation6 + $0x8] sm:$0xff]
    %v41 = vcombine.high %v37, %v37
    %v42 = vcombine.high %v38, %v38
    %vm45 = vcmask 1043456
    %v46 = vsel %vm45, %v37, 0.0
    %v47 = vsel %vm45, %v41, 0.0
    %v48 = vadd.f32 %v46, %v47
    %49 = vadd.xlane.f32.xlu0 %v48
    %v50 = vpop.xlane.xlu0 %49
    %v51 = vsel %vm45, %v38, 0.0
    %v52 = vsel %vm45, %v42, 0.0
    %v53 = vadd.f32 %v51, %v52
    %54 = vadd.xlane.f32.xlu0 %v53
    %v55 = vpop.xlane.xlu0 %54
    %v56 = vmul.f32 %v50, 0.00390625
    %v57 = vmul.f32 %v55, 0.00390625
    %v60 = vlaneseq
    %v61 = vand.u32 %v60, 127
    %v62 = vadd.s32 %v61, 4294967295
    %v63 = vlaneseq
    %v64 = vshrl.u32 %v63, 7
    %v65 = vsub.s32 %v62, %v64
    %v66 = vrot.slane %v56, %v65
    %v67 = vlaneseq
    %v68 = vshrl.u32 %v67, 7
    %v69 = vsub.s32 %v62, %v68
    %v70 = vrot.slane %v57, %v69
    %vm71 = vcmask 1041409
    %v72 = vsel %vm71, %v70, %v66
    %vm74 = vcmask 7168
    %v75 = vsel %vm74, 0.0, %v72
    %vm76 = vcmask 39936
    %v77 = vsel %vm76, %v75, 0.0
    %s78 = sld [smem:[#allocation2]]
    %v79 = vstv %s78
    %v80 = vmul.f32 %v79, %v77
    %v81 = vadd.f32 %v80, 0.0
    %s82 = sld [smem:[#allocation2 + $0x1]]
    %v83 = vstv %s82
    %v84 = vmul.f32 %v83, %v77
    %86 = vrot.lane.b32.xlu0 %v84, 127
    %v87 = vpop.permute.xlu0 %86
    %v89 = vadd.f32 %v81, %v87
    %s90 = sld [smem:[#allocation2 + $0x2]]
    %v91 = vstv %s90
    %v92 = vmul.f32 %v91, %v77
    %94 = vrot.lane.b32.xlu0 %v92, 126
    %v95 = vpop.permute.xlu0 %94
    %v97 = vadd.f32 %v89, %v95
    %v98 = vxor.u32 %v97, 2147483648
    %v99 = vmul.f32 %v98, 1.442695
    %v100 = vpow.pop %v99
    %v101 = vadd.f32 %v100, 1.0
    %v102 = vrcp.pop %v101
    %v103 = vmul.f32 1.0, %v102
    %v104 = vlaneseq
    %v105 = vshrl.u32 %v104, 7
    %v106 = vsub.s32 0, %v105
    %v107 = vrot.slane %v103, %v106
    %109 = vbcast.lane.b32.xlu0 %v107, 256
    %v110 = vpop.permute.xlu0 %109
    %v111 = vlaneseq
    %v112 = vshrl.u32 %v111, 7
    %v113 = vsub.s32 1, %v112
    %v114 = vrot.slane %v103, %v113
    %116 = vbcast.lane.b32.xlu0 %v114, 256
    %v117 = vpop.permute.xlu0 %116
    %v121 = vunpack.c.l.s4 839922192
    %v122 = vunpack.c.0.s8 %v121
    %v123 = vlaneseq
    %v124 = vshrl.u32 %v123, 7
    %v125 = vsub.s32 %v122, %v124
    %v126 = vrot.slane %v110, %v125
    %v128 = vunpack.c.l.s4 839922192
    %v129 = vunpack.c.0.s8 %v128
    %v130 = vlaneseq
    %v131 = vshrl.u32 %v130, 7
    %v132 = vsub.s32 %v129, %v131
    %v133 = vrot.slane %v117, %v132
    %v136 = vmul.f32 %v37, %v126
    %v137 = vmul.f32 %v38, %v133
    %138 = vst [vmem:[#allocation7] sm:$0xff] %v136
    %139 = vst [vmem:[#allocation7 + $0x8] sm:$0xff] %v137
    // Predicated region
    $region18: #{tpu_custom_call.1} parent=1 // pred_check
      _
    $region19: #{tpu_custom_call.1} parent=1 // pred_check_branch
      %141 = sbr.rel (0) target = $region21
    $region20: #{tpu_custom_call.1} parent=1 // pred_region
      %s143 = ssub.s32 256, 256
      %144 = vsyncadd [#allocation4], %s143
      %s145 = sshll.u32 [#allocation7], 4
      %s146 = int_to_ptr.vmem [resolvable:$true] %s145
      %151 = dma.vmem_to_hbm [thread:$0]  %s146, 256, %s2, [#allocation4], 128, 128, 8
    $region21: #{tpu_custom_call.1} parent=1 // pred_fallthru
      _
    // Predicated region
    $region22: #{tpu_custom_call.1} parent=1 // pred_check
      _
    $region23: #{tpu_custom_call.1} parent=1 // pred_check_branch
      %153 = sbr.rel (0) target = $region25
    $region24: #{tpu_custom_call.1} parent=1 // pred_region
      %154 = dma.done [#allocation4], 256
    $region25: #{tpu_custom_call.1} parent=1 // pred_fallthru
      _
    %155 = vsyncpa [#allocation3], 1
    %156 = vsyncpa [#allocation4], 1
    %157 = vsyncpa [#allocation5], 1

</llo_original>
